<compile_context>
chip_gen: v7x
topology: tpu7x:2x2x1
jax: 0.10.0
libtpu: 0.0.40
codegen_flags: <defaults>
</compile_context>

<pallas_src>
import jax
import jax.numpy as jnp
from jax.experimental import pallas as pl
from jax.experimental.pallas import tpu as pltpu

_EPS = 1e-8


def _instance_norm1d_kernel(x_ref, o_ref):
    # Block: (TB, C, TL).  Normalize over axis 1 (C == sublane axis).
    x = x_ref[...].astype(jnp.float32)
    inv_c = jnp.float32(1.0 / x.shape[1])
    mu = jnp.sum(x, axis=1, keepdims=True) * inv_c           # (TB, 1, TL)
    d = x - mu                                               # reused below
    var = jnp.sum(d * d, axis=1, keepdims=True) * inv_c      # unbiased=False
    # Spec semantics: (x - mean) / (std + 1e-8)  (eps OUTSIDE the sqrt).
    inv_std = 1.0 / (jnp.sqrt(var) + _EPS)                   # (TB, 1, TL)
    o_ref[...] = (d * inv_std).astype(o_ref.dtype)


def _tile_byte_target():
    """Per-generation per-step input-tile byte target.

    v6e/v7x have a 32 MiB default scoped-VMEM limit, so a 4 MiB tile
    (~24 MiB live with the ~6x factor) amortizes the ~0.35 us/step overhead
    against v7x's ~3.2 TB/s HBM.  Everything else (v5e: 16 MiB scoped default)
    gets the safe 2 MiB target, which already sits near the HBM roofline there.
    """
    try:
        kind = jax.devices()[0].device_kind.lower()
    except Exception:
        kind = ""
    if ("v6" in kind) or ("v7" in kind) or ("7x" in kind):
        return 4 << 20
    return 2 << 20


def _pick_tiles(B, C, L, target_bytes):
    """Choose (TB, TL): batch-block and lane-tile sizes.

    The kernel is HBM-streaming bound, so each grid step should move roughly
    `target_bytes` of input (in f32 terms) to amortize the fixed per-step
    cost, while the ~6x live-set factor keeps VMEM bounded.
    """
    col_bytes = C * 4                                  # one lane column, f32
    # --- lane tile ---
    if L <= 128:
        tl = L                    # full extent satisfies the (8,128) rule
    else:
        max_tl = max(128, min((target_bytes // col_bytes) // 128 * 128, 8192))
        if L <= max_tl:
            tl = L                # whole L in one lane-dense tile
        else:
            # Prefer a 128-multiple that divides L (within 2x of the budget)
            # so the trailing tile is not a masked sliver.
            tl = max_tl
            lo = max(128, (max_tl // 2 // 128) * 128)
            for cand in range(max_tl, lo - 1, -128):
                if L % cand == 0:
                    tl = cand
                    break
    # --- batch block: key for small C, amortizes per-step overhead ---
    tile_bytes = max(C * tl * 4, 1)
    tb = int(max(1, min(B, target_bytes // tile_bytes)))
    return tb, tl


def instance_norm1d(x, *, target_bytes=None):
    """x: (B, C, L). Normalize over axis 1: (x - mean) / (std + 1e-8)."""
    B, C, L = x.shape
    if target_bytes is None:
        target_bytes = _tile_byte_target()
    tb, tl = _pick_tiles(B, C, L, target_bytes)
    grid = (pl.cdiv(B, tb), pl.cdiv(L, tl))

    # Honest live-set estimate (f32): 2x in + 2x out (double-buffered) + f32
    # cast copy + centered `d` ~= 6x the tile.  Only raise the scoped-VMEM
    # limit when a tall-C tile would overshoot the per-generation defaults.
    est_live = 6 * tb * C * tl * 4
    params = dict(dimension_semantics=("parallel", "parallel"))
    if est_live > (24 << 20):
        params["vmem_limit_bytes"] = int(min(est_live + (4 << 20), 56 << 20))
        # TODO(synk): for C so large that even a 128-lane tile exceeds ~56 MiB
        # of live VMEM, add a C-reduction grid axis with accumulator scratch.

    return pl.pallas_call(
        _instance_norm1d_kernel,
        out_shape=jax.ShapeDtypeStruct((B, C, L), x.dtype),
        grid_spec=pltpu.PrefetchScalarGridSpec(
            num_scalar_prefetch=0,
            grid=grid,
            in_specs=[pl.BlockSpec((tb, C, tl), lambda b, l: (b, 0, l))],
            out_specs=pl.BlockSpec((tb, C, tl), lambda b, l: (b, 0, l)),
        ),
        compiler_params=pltpu.CompilerParams(**params),
    )(x)


def _reference(x):
    xf = x.astype(jnp.float32)
    mu = jnp.mean(xf, axis=1, keepdims=True)
    std = jnp.sqrt(jnp.mean((xf - mu) ** 2, axis=1, keepdims=True))
    return ((xf - mu) / (std + _EPS)).astype(x.dtype)


if __name__ == "__main__":
    key = jax.random.PRNGKey(0)

    # Primary small test matching the module's forward: (B, C, L).
    B, C, L = 2, 4, 16
    x = jax.random.normal(key, (B, C, L), dtype=jnp.float32) * 3.0 + 1.5
    out = jax.block_until_ready(instance_norm1d(x))
    ref = _reference(x)
    assert out.shape == x.shape and out.dtype == x.dtype
    assert jnp.max(jnp.abs(out - ref)) < 1e-5

    # Secondary check: force the batch-blocked + lane-tiled path (tiny byte
    # target -> TB=2, TL=128, grid=(2, 5)) including a padded trailing batch
    # block, to validate the multi-tile code path at small absolute size.
    x2 = jax.random.normal(jax.random.PRNGKey(0), (3, 4, 640),
                           dtype=jnp.float32) * 2.0 - 0.5
    out2 = jax.block_until_ready(instance_norm1d(x2, target_bytes=4096))
    assert jnp.max(jnp.abs(out2 - _reference(x2))) < 1e-5

    # bf16 path: compute in f32, cast back to input dtype.
    x3 = (jax.random.normal(jax.random.PRNGKey(0), (2, 8, 256)) * 1.3
          + 0.7).astype(jnp.bfloat16)
    out3 = jax.block_until_ready(instance_norm1d(x3))
    ref3 = _reference(x3)
    assert out3.dtype == jnp.bfloat16
    assert jnp.max(jnp.abs(out3.astype(jnp.float32)
                           - ref3.astype(jnp.float32))) < 5e-2

    print("KERNEL_OK")
</pallas_src>

<mosaic_0001>
module attributes {stable_mosaic.version = 11 : i64} {
  func.func @_instance_norm1d_kernel(%arg0: i32, %arg1: i32, %arg2: memref<2x4x16xf32, #tpu.memory_space<vmem>>, %arg3: memref<2x4x16xf32, #tpu.memory_space<vmem>>) attributes {dimension_semantics = [#tpu.dimension_semantics<parallel>, #tpu.dimension_semantics<parallel>], iteration_bounds = array<i64: 1, 1>, scalar_prefetch = 0 : i64, scratch_operands = 0 : i64, tpu.core_type = #tpu.core_type<tc>, window_params = [{transform_indices = @transform_0, window_bounds = array<i64: 2, 4, 16>}, {transform_indices = @transform_1, window_bounds = array<i64: 2, 4, 16>}]} {
    %c0 = arith.constant 0 : index
    %c0_0 = arith.constant 0 : index
    %c0_1 = arith.constant 0 : index
    %0 = vector.load %arg2[%c0, %c0_0, %c0_1] : memref<2x4x16xf32, #tpu.memory_space<vmem>>, vector<2x4x16xf32>
    %cst = arith.constant dense<0.000000e+00> : vector<2x16xf32>
    %1 = vector.multi_reduction <add>, %0, %cst [1] : vector<2x4x16xf32> to vector<2x16xf32>
    %2 = vector.shape_cast %1 : vector<2x16xf32> to vector<2x1x16xf32>
    %cst_2 = arith.constant 2.500000e-01 : f32
    %3 = vector.broadcast %cst_2 : f32 to vector<2x1x16xf32>
    %4 = arith.mulf %2, %3 : vector<2x1x16xf32>
    %5 = vector.broadcast %4 : vector<2x1x16xf32> to vector<2x4x16xf32>
    %6 = arith.subf %0, %5 : vector<2x4x16xf32>
    %7 = arith.mulf %6, %6 : vector<2x4x16xf32>
    %cst_3 = arith.constant dense<0.000000e+00> : vector<2x16xf32>
    %8 = vector.multi_reduction <add>, %7, %cst_3 [1] : vector<2x4x16xf32> to vector<2x16xf32>
    %9 = vector.shape_cast %8 : vector<2x16xf32> to vector<2x1x16xf32>
    %cst_4 = arith.constant 2.500000e-01 : f32
    %10 = vector.broadcast %cst_4 : f32 to vector<2x1x16xf32>
    %11 = arith.mulf %9, %10 : vector<2x1x16xf32>
    %12 = math.sqrt %11 : vector<2x1x16xf32>
    %cst_5 = arith.constant 9.99999993E-9 : f32
    %13 = vector.broadcast %cst_5 : f32 to vector<2x1x16xf32>
    %14 = arith.addf %12, %13 : vector<2x1x16xf32>
    %cst_6 = arith.constant 1.000000e+00 : f32
    %15 = vector.broadcast %cst_6 : f32 to vector<2x1x16xf32>
    %16 = arith.divf %15, %14 : vector<2x1x16xf32>
    %17 = vector.broadcast %16 : vector<2x1x16xf32> to vector<2x4x16xf32>
    %18 = arith.mulf %6, %17 : vector<2x4x16xf32>
    %c0_7 = arith.constant 0 : index
    %c0_8 = arith.constant 0 : index
    %c0_9 = arith.constant 0 : index
    %19 = vector.load %arg3[%c0_7, %c0_8, %c0_9] : memref<2x4x16xf32, #tpu.memory_space<vmem>>, vector<2x4x16xf32>
    tpu.vector_store %arg3[%c0_7, %c0_8, %c0_9], %18 {strides = array<i32>} : memref<2x4x16xf32, #tpu.memory_space<vmem>>, vector<2x4x16xf32>,
    return
  }
  func.func @transform_0(%arg0: i32, %arg1: i32) -> (i32, i32, i32) {
    %c0_i32 = arith.constant 0 : i32
    %c0_i32_0 = arith.constant 0 : i32
    return %arg0, %c0_i32, %arg1 : i32, i32, i32
  }
  func.func @transform_1(%arg0: i32, %arg1: i32) -> (i32, i32, i32) {
    %c0_i32 = arith.constant 0 : i32
    %c0_i32_0 = arith.constant 0 : i32
    return %arg0, %c0_i32, %arg1 : i32, i32, i32
  }
}

</mosaic_0001>

<llo_original>
// kernel: tpu_custom_call.1
$region0: #{tpu_custom_call.1}
  #allocation0 [shape = 'u32[]', space=smem, size = 0x4, offset = 0x4, fixed_abs, tag = 'smem constant byte address 0x4 - core index']
  #allocation1 [shape = 'u32[144,128]{1,0:T(1,128)}', space=vmem, size = 0x12000, scoped, tag = 'internal scratch']
  %s0 = inlined_call_operand.hbm [shape: f32[2,4,16], index: 0, kind: input, shape index: {}]
  %s1 = inlined_call_operand.hbm [shape: f32[2,4,16], index: 1, kind: output, shape index: {}]
  %s2 = sld [smem:[#allocation0]]
  $region18: #{tpu_custom_call.1} parent=0
    _
  %s4 = ssub.s32 1, %s2
  %s5 = scalar_select 0, %s4, %s2
  $region1: #{tpu_custom_call.1} parent=0
    #allocation2 [shape = 'u8[4096]{0}', space=vmem, size = 0x1000, scoped, tag = 'input window, operand 0, single buffered']
    #allocation3 [shape = 's32[1]{0}', space=sflag, size = 0x4, scoped, tag = 'scoped memory for tpu_custom_call.1']
    #allocation4 [shape = 's32[1]{0}', space=sflag, size = 0x4, scoped, tag = 'scoped memory for tpu_custom_call.1']
    #allocation5 [shape = 'u8[4096]{0}', space=vmem, size = 0x1000, scoped, tag = 'output window, operand 0, single buffered']
    %6 = vsyncpa [#allocation3], 0
    %7 = vsyncpa [#allocation4], 0
    // Predicated region
    $region2: #{tpu_custom_call.1} parent=1 // pred_check
      _
    $region3: #{tpu_custom_call.1} parent=1 // pred_check_branch
      %9 = sbr.rel (0) target = $region5
    $region4: #{tpu_custom_call.1} parent=1 // pred_region
      %s11 = ssub.s32 128, 128
      %12 = vsyncadd [#allocation3], %s11
      %s13 = sshll.u32 [#allocation2], 4
      %s14 = int_to_ptr.vmem [resolvable:$true] %s13
      %19 = dma.hbm_to_vmem [thread:$0]  %s0, 128, %s14, [#allocation3], 64, 64, 4
    $region5: #{tpu_custom_call.1} parent=1 // pred_fallthru
      _
    // Predicated region
    $region6: #{tpu_custom_call.1} parent=1 // pred_check
      _
    $region7: #{tpu_custom_call.1} parent=1 // pred_check_branch
      %21 = sbr.rel (0) target = $region9
    $region8: #{tpu_custom_call.1} parent=1 // pred_region
      %22 = dma.done [#allocation3], 128
    $region9: #{tpu_custom_call.1} parent=1 // pred_fallthru
      _
    %v23 = vld [vmem:[#allocation2] sm:$0xf]
    %v24 = vld [vmem:[#allocation2 + $0x4] sm:$0xf]
    %vm25 = vcmask 125952
    %v26 = vsel %vm25, %v23, 0.0
    %v27 = vrot.slane %v26, 4
    %v28 = vadd.f32 %v26, %v27
    %v29 = vrot.slane %v28, 2
    %v30 = vadd.f32 %v28, %v29
    %v31 = vrot.slane %v30, 1
    %v32 = vadd.f32 %v30, %v31
    %v33 = vsel %vm25, %v24, 0.0
    %v34 = vrot.slane %v33, 4
    %v35 = vadd.f32 %v33, %v34
    %v36 = vrot.slane %v35, 2
    %v37 = vadd.f32 %v35, %v36
    %v38 = vrot.slane %v37, 1
    %v39 = vadd.f32 %v37, %v38
    %v40 = vmul.f32 %v32, 0.25
    %v41 = vmul.f32 %v39, 0.25
    %v42 = vsub.f32 %v23, %v40
    %v43 = vsub.f32 %v24, %v41
    %v44 = vmul.f32 %v42, %v42
    %v45 = vmul.f32 %v43, %v43
    %v46 = vsel %vm25, %v44, 0.0
    %v47 = vrot.slane %v46, 4
    %v48 = vadd.f32 %v46, %v47
    %v49 = vrot.slane %v48, 2
    %v50 = vadd.f32 %v48, %v49
    %v51 = vrot.slane %v50, 1
    %v52 = vadd.f32 %v50, %v51
    %v53 = vsel %vm25, %v45, 0.0
    %v54 = vrot.slane %v53, 4
    %v55 = vadd.f32 %v53, %v54
    %v56 = vrot.slane %v55, 2
    %v57 = vadd.f32 %v55, %v56
    %v58 = vrot.slane %v57, 1
    %v59 = vadd.f32 %v57, %v58
    %v60 = vmul.f32 %v52, 0.25
    %v61 = vmul.f32 %v59, 0.25
    %v62 = vrsqrt.pop %v60
    %v63 = vmul.f32 %v60, %v62
    %vm64 = vcmp.eq.f32.partialorder %v60, inf
    %v65 = vsel %vm64, %v60, %v63
    %vm66 = vcmp.eq.f32.partialorder %v60, 0.0
    %v67 = vand.u32 %v60, 2147483648
    %v68 = vsel %vm66, %v67, %v65
    %v69 = vrsqrt.pop %v61
    %v70 = vmul.f32 %v61, %v69
    %vm71 = vcmp.eq.f32.partialorder %v61, inf
    %v72 = vsel %vm71, %v61, %v70
    %vm73 = vcmp.eq.f32.partialorder %v61, 0.0
    %v74 = vand.u32 %v61, 2147483648
    %v75 = vsel %vm73, %v74, %v72
    %v76 = vadd.f32 %v68, 1e-08
    %v77 = vadd.f32 %v75, 1e-08
    %v78 = vrcp.pop %v76
    %v79 = vmul.f32 1.0, %v78
    %v80 = vrcp.pop %v77
    %v81 = vmul.f32 1.0, %v80
    %v82 = vmul.f32 %v42, %v79
    %v83 = vmul.f32 %v43, %v81
    %84 = vst.msk [vmem:[#allocation5] sm:$0xf] %vm25, %v82
    %85 = vst.msk [vmem:[#allocation5 + $0x4] sm:$0xf] %vm25, %v83
    // Predicated region
    $region10: #{tpu_custom_call.1} parent=1 // pred_check
      _
    $region11: #{tpu_custom_call.1} parent=1 // pred_check_branch
      %87 = sbr.rel (0) target = $region13
    $region12: #{tpu_custom_call.1} parent=1 // pred_region
      %s89 = ssub.s32 128, 128
      %90 = vsyncadd [#allocation4], %s89
      %s91 = sshll.u32 [#allocation5], 4
      %s92 = int_to_ptr.vmem [resolvable:$true] %s91
      %97 = dma.vmem_to_hbm [thread:$0]  %s92, 128, %s1, [#allocation4], 64, 64, 4
    $region13: #{tpu_custom_call.1} parent=1 // pred_fallthru
      _
    // Predicated region
    $region14: #{tpu_custom_call.1} parent=1 // pred_check
      _
    $region15: #{tpu_custom_call.1} parent=1 // pred_check_branch
      %99 = sbr.rel (0) target = $region17
    $region16: #{tpu_custom_call.1} parent=1 // pred_region
      %100 = dma.done [#allocation4], 128
    $region17: #{tpu_custom_call.1} parent=1 // pred_fallthru
      _
    %101 = vsyncpa [#allocation3], 1
    %102 = vsyncpa [#allocation4], 1

</llo_original>
